<compile_context>
chip_gen: v7x
topology: tpu7x:2x2x1
jax: 0.10.0
libtpu: 0.0.40
codegen_flags: <defaults>
</compile_context>

<pallas_src>
import jax
import jax.numpy as jnp
from jax.experimental import pallas as pl
from jax.experimental.pallas import tpu as pltpu

_LANE = 128
_NUM_CORE_SPLITS = 2     # leading parallel axis of pass 1 (v7x dual-TC; harmless on v5e/v6e)


def _round_up(v, m):
    return -(-v // m) * m


def _vmem_limit_bytes():
    """Scoped-VMEM limit: 3/4 of physical VMEM (64-MiB conservative fallback = v7x per-TC)."""
    cap = 64 * 1024 * 1024
    try:
        info = pltpu.get_tpu_info()
        c = getattr(info, "vmem_capacity_bytes", None)
        if c:
            cap = int(c)
    except Exception:
        pass
    return min((cap * 3) // 4, 96 * 1024 * 1024)


def _pick_lane_block(L, N, vmem_limit):
    """Largest multiple-of-128 lane block such that ~8 live (N, TL) f32 buffers in pass 2
    (double-buffered input, two double-buffered outputs, in-kernel intermediates) stay within
    half the scoped-VMEM limit.  Uses padded sublane rows, capped at 16K lanes."""
    n_pad = _round_up(max(N, 1), 8)
    per_lane = 8 * n_pad * 4                       # bytes per lane column across live buffers
    cap = max(_LANE, ((vmem_limit // 2) // per_lane) // _LANE * _LANE)
    tl = min(cap, 16384, _round_up(max(L, 1), _LANE))
    return max(_LANE, tl)


def _batch_sum_kernel(x_ref, part_ref):
    """Pass 1: accumulate lane-chunk sums of the lane-dense inputs into a resident (1, N, 128)
    per-core partial.  The wrapper folds chunks mod X into the batch mean."""

    @pl.when(pl.program_id(1) == 0)
    def _init():
        part_ref[...] = jnp.zeros_like(part_ref)

    x = x_ref[...]                                               # (N, TL) f32
    s = x[:, 0:_LANE]
    for g in range(1, x.shape[1] // _LANE):                      # lane-aligned vreg slices
        s = s + x[:, g * _LANE:(g + 1) * _LANE]
    part_ref[...] += s[None, :, :]


def _center_logits_kernel(x_ref, a_ref, mt_ref, cent_ref, logit_ref):
    """Pass 2: centered = x - meanF (lane-tiled); logits = adj_Aforz @ centered, lane-dense."""
    x = x_ref[...]                                               # (N, TL)
    a = a_ref[...]                                               # (N, N)
    tl = x.shape[1]

    # Tile the (N, 128) mean to (N, TL) with lane-aligned concatenation (no relayout).
    mt = mt_ref[...]
    while mt.shape[1] < tl:
        mt = jnp.concatenate([mt, mt], axis=1)
    mt = mt[:, :tl]

    centered = x - mt
    cent_ref[...] = centered
    logit_ref[...] = jnp.dot(a, centered, preferred_element_type=jnp.float32)


def linear_sem_encoder_forward(inputs, adj_A, mask_A, z, z_positive, Wa, *, lane_block=None):
    """inputs: (B, n_in, n_xdims) f32; adj_A, mask_A: (n_in, n_in) f32."""
    inputs = inputs.astype(jnp.float32)
    B, N, X = inputs.shape
    assert _LANE % X == 0, "lane-dense layout assumes n_xdims divides 128"

    # Batch-independent adjacency preprocessing (tiny (N, N); kept out of the batched kernels).
    adj_A1 = jnp.sinh(3.0 * adj_A.astype(jnp.float32) * mask_A.astype(jnp.float32))
    adj_Aforz = jnp.eye(N, dtype=jnp.float32) - adj_A1.T
    # adj_A_inv eliminated: A^-1 @ mean_b(A @ x_b) == mean_b(x_b).

    vmem_limit = _vmem_limit_bytes()

    # Lane-dense layout (N, B*X), lane order (b, x).
    L = B * X
    x2 = jnp.transpose(inputs, (1, 0, 2)).reshape(N, L)

    TL = lane_block if lane_block is not None else _pick_lane_block(L, N, vmem_limit)
    assert TL % _LANE == 0
    g_total = -(-L // TL)
    g_inner = -(-g_total // _NUM_CORE_SPLITS)
    Lp = _NUM_CORE_SPLITS * g_inner * TL
    if Lp > L:
        x2 = jnp.pad(x2, ((0, 0), (0, Lp - L)))                  # zero pad: adds 0 to the sums

    # Pass 1: per-core partial chunk sums (pure VPU streaming reduction, HBM-roofline bound).
    partials = pl.pallas_call(
        _batch_sum_kernel,
        out_shape=jax.ShapeDtypeStruct((_NUM_CORE_SPLITS, N, _LANE), jnp.float32),
        grid_spec=pltpu.PrefetchScalarGridSpec(
            num_scalar_prefetch=0,
            grid=(_NUM_CORE_SPLITS, g_inner),
            in_specs=[pl.BlockSpec((N, TL), lambda c, g: (0, c * g_inner + g))],
            out_specs=pl.BlockSpec((1, N, _LANE), lambda c, g: (c, 0, 0)),
        ),
        compiler_params=pltpu.CompilerParams(
            dimension_semantics=("parallel", "arbitrary"),       # core-split / reduction axis
            vmem_limit_bytes=vmem_limit),
    )(x2)

    # Tiny (N, 128) epilogue: combine core partials, fold 128-lane chunks mod X -> batch mean,
    # re-tile to a full lane tile for the pass-2 subtraction.
    chunk_sum = jnp.sum(partials, axis=0)                        # (N, 128)
    meanF = chunk_sum.reshape(N, _LANE // X, X).sum(axis=1) / B  # (N, X)
    meanT = jnp.tile(meanF, (1, _LANE // X))                     # (N, 128)

    # Pass 2: centered + logits, one (N,N) x (N,TL) MXU matmul per lane block, lane-dense I/O.
    cent2, logit2 = pl.pallas_call(
        _center_logits_kernel,
        out_shape=(jax.ShapeDtypeStruct((N, Lp), jnp.float32),
                   jax.ShapeDtypeStruct((N, Lp), jnp.float32)),
        grid_spec=pltpu.PrefetchScalarGridSpec(
            num_scalar_prefetch=0,
            grid=(Lp // TL,),
            in_specs=[pl.BlockSpec((N, TL), lambda g: (0, g)),
                      pl.BlockSpec((N, N), lambda g: (0, 0)),
                      pl.BlockSpec((N, _LANE), lambda g: (0, 0))],
            out_specs=[pl.BlockSpec((N, TL), lambda g: (0, g)),
                       pl.BlockSpec((N, TL), lambda g: (0, g))],
        ),
        compiler_params=pltpu.CompilerParams(
            dimension_semantics=("parallel",),                   # independent blocks (dual-TC)
            vmem_limit_bytes=vmem_limit),
    )(x2, adj_Aforz, meanT)

    # Back to the module's (B, N, X) layout.
    centered = cent2[:, :L].reshape(N, B, X).transpose(1, 0, 2)
    logits = logit2[:, :L].reshape(N, B, X).transpose(1, 0, 2)
    return centered, logits, adj_A1, adj_Aforz, z, z_positive, adj_A, Wa


def linear_sem_encoder_reference(inputs, adj_A, mask_A):
    """Plain-JAX reference matching the PyTorch forward (explicit inverse path)."""
    adj_A1 = jnp.sinh(3.0 * adj_A * mask_A)
    n = adj_A1.shape[0]
    adj_Aforz = jnp.eye(n, dtype=jnp.float32) - adj_A1.T
    adj_A_inv = jnp.linalg.inv(adj_Aforz)
    Ax = jnp.einsum('ij,bjk->bik', adj_Aforz, inputs)
    meanF = adj_A_inv @ jnp.mean(Ax, axis=0)
    centered = inputs - meanF
    logits = jnp.einsum('ij,bjk->bik', adj_Aforz, centered)
    return centered, logits, adj_A1, adj_Aforz


def _run_case(B, n_in, n_xdims, seed, lane_block=None):
    key = jax.random.PRNGKey(seed)
    k_in, k_adj, k_mask = jax.random.split(key, 3)

    inputs = jax.random.normal(k_in, (B, n_in, n_xdims), jnp.float32)
    adj_A = 0.1 * jax.random.normal(k_adj, (n_in, n_in), jnp.float32)
    mask_A = (jax.random.uniform(k_mask, (n_in, n_in)) > 0.5).astype(jnp.float32)

    z = jnp.float32(0.1)
    z_positive = jnp.ones((n_in, n_in), jnp.float32)
    Wa = jnp.zeros((n_xdims,), jnp.float32)

    outs = linear_sem_encoder_forward(inputs, adj_A, mask_A, z, z_positive, Wa,
                                      lane_block=lane_block)
    jax.block_until_ready(outs)
    centered, logits, adj_A1, adj_Aforz, _, _, _, _ = outs

    c_ref, l_ref, a1_ref, af_ref = linear_sem_encoder_reference(inputs, adj_A, mask_A)
    assert centered.shape == (B, n_in, n_xdims) and logits.shape == (B, n_in, n_xdims)
    assert jnp.allclose(centered, c_ref, atol=1e-4, rtol=1e-4), "centered mismatch"
    assert jnp.allclose(logits, l_ref, atol=1e-4, rtol=1e-4), "logits mismatch"
    assert jnp.allclose(adj_A1, a1_ref, atol=1e-6), "adj_A1 mismatch"
    assert jnp.allclose(adj_Aforz, af_ref, atol=1e-6), "adj_Aforz mismatch"


if __name__ == "__main__":
    # Small shapes consistent with the module: n_in graph nodes, n_xdims features per node.
    _run_case(B=2, n_in=8, n_xdims=4, seed=0)
    # Odd batch + forced small lane block: exercises cdiv padding, multi-block grid and the
    # pass-1 accumulator across inner grid steps.
    _run_case(B=67, n_in=8, n_xdims=4, seed=1, lane_block=128)
    print("KERNEL_OK")
</pallas_src>

<mosaic_0001>
module attributes {stable_mosaic.version = 11 : i64} {
  func.func @_batch_sum_kernel(%arg0: i32, %arg1: i32, %arg2: memref<8x128xf32, #tpu.memory_space<vmem>>, %arg3: memref<1x8x128xf32, #tpu.memory_space<vmem>>) attributes {dimension_semantics = [#tpu.dimension_semantics<parallel>, #tpu.dimension_semantics<arbitrary>], iteration_bounds = array<i64: 2, 1>, scalar_prefetch = 0 : i64, scratch_operands = 0 : i64, tpu.core_type = #tpu.core_type<tc>, window_params = [{transform_indices = @transform_0, window_bounds = array<i64: 8, 128>}, {transform_indices = @transform_1, window_bounds = array<i64: 1, 8, 128>}]} {
    %c0_i32 = arith.constant 0 : i32
    %0 = arith.cmpi eq, %arg1, %c0_i32 : i32
    %1 = arith.extui %0 : i1 to i32
    %c0_i32_0 = arith.constant 0 : i32
    %2 = arith.cmpi ne, %1, %c0_i32_0 : i32
    scf.if %2 {
      %cst = arith.constant 0.000000e+00 : f32
      %8 = vector.broadcast %cst : f32 to vector<1x8x128xf32>
      %c0_8 = arith.constant 0 : index
      %c0_9 = arith.constant 0 : index
      %c0_10 = arith.constant 0 : index
      %9 = vector.load %arg3[%c0_8, %c0_9, %c0_10] : memref<1x8x128xf32, #tpu.memory_space<vmem>>, vector<1x8x128xf32>
      tpu.vector_store %arg3[%c0_8, %c0_9, %c0_10], %8 {strides = array<i32>} : memref<1x8x128xf32, #tpu.memory_space<vmem>>, vector<1x8x128xf32>,
    } else {
    }
    %c0 = arith.constant 0 : index
    %c0_1 = arith.constant 0 : index
    %3 = vector.load %arg2[%c0, %c0_1] : memref<8x128xf32, #tpu.memory_space<vmem>>, vector<8x128xf32>
    %c0_2 = arith.constant 0 : index
    %c0_3 = arith.constant 0 : index
    %c0_4 = arith.constant 0 : index
    %4 = vector.load %arg3[%c0_2, %c0_3, %c0_4] : memref<1x8x128xf32, #tpu.memory_space<vmem>>, vector<1x8x128xf32>
    %5 = vector.shape_cast %3 : vector<8x128xf32> to vector<1x8x128xf32>
    %6 = arith.addf %4, %5 : vector<1x8x128xf32>
    %c0_5 = arith.constant 0 : index
    %c0_6 = arith.constant 0 : index
    %c0_7 = arith.constant 0 : index
    %7 = vector.load %arg3[%c0_5, %c0_6, %c0_7] : memref<1x8x128xf32, #tpu.memory_space<vmem>>, vector<1x8x128xf32>
    tpu.vector_store %arg3[%c0_5, %c0_6, %c0_7], %6 {strides = array<i32>} : memref<1x8x128xf32, #tpu.memory_space<vmem>>, vector<1x8x128xf32>,
    return
  }
  func.func @transform_0(%arg0: i32, %arg1: i32) -> (i32, i32) {
    %c1_i32 = arith.constant 1 : i32
    %0 = arith.muli %arg0, %c1_i32 : i32
    %1 = arith.addi %0, %arg1 : i32
    %c0_i32 = arith.constant 0 : i32
    %c0_i32_0 = arith.constant 0 : i32
    return %c0_i32, %1 : i32, i32
  }
  func.func @transform_1(%arg0: i32, %arg1: i32) -> (i32, i32, i32) {
    %c0_i32 = arith.constant 0 : i32
    %c0_i32_0 = arith.constant 0 : i32
    %c0_i32_1 = arith.constant 0 : i32
    return %arg0, %c0_i32, %c0_i32_0 : i32, i32, i32
  }
}

</mosaic_0001>

<llo_original>
// kernel: tpu_custom_call.1
$region0: #{tpu_custom_call.1}
  #allocation0 [shape = 'u32[]', space=smem, size = 0x4, offset = 0x4, fixed_abs, tag = 'smem constant byte address 0x4 - core index']
  #allocation1 [shape = 'u32[144,128]{1,0:T(1,128)}', space=vmem, size = 0x12000, scoped, tag = 'internal scratch']
  %s0 = inlined_call_operand.hbm [shape: f32[8,256], index: 0, kind: input, shape index: {}]
  %s1 = inlined_call_operand.hbm [shape: f32[2,8,128], index: 1, kind: output, shape index: {}]
  %s2 = sld [smem:[#allocation0]]
  $region45: #{tpu_custom_call.1} parent=0
    _
  %s4 = ssub.s32 1, %s2
  %s5 = scalar_select 0, %s4, %s2
  $region1: #{tpu_custom_call.1} parent=0
    #allocation2 [shape = 'u8[8192]{0}', space=vmem, size = 0x2000, scoped, tag = 'input window, operand 0']
    #allocation3 [shape = 's32[2]{0}', space=sflag, size = 0x8, scoped, tag = 'scoped memory for tpu_custom_call.1']
    #allocation4 [shape = 's32[2]{0}', space=sflag, size = 0x8, scoped, tag = 'scoped memory for tpu_custom_call.1']
    #allocation5 [shape = 'u8[8192]{0}', space=vmem, size = 0x2000, scoped, tag = 'output window, operand 0']
    %6 = vsyncpa [#allocation3], 0
    %s7 = scalar_lea.sflag [#allocation3], 1
    %8 = vsyncpa %s7, 0
    %9 = vsyncpa [#allocation4], 0
    %s10 = scalar_lea.sflag [#allocation4], 1
    %11 = vsyncpa %s10, 0
    loop: start=0, step=1, limit=4
    $region2: #{tpu_custom_call.1} parent=1 // loop_pre_header
      _
    $region3: #{tpu_custom_call.1} parent=1 // loop_header
      %s13 = sphi 0, %s17
      %p14 = scmp.ge.s32.totalorder %s13, 4
      %s20 = sphi 0, %s32
      %s21 = sphi 0, %s28
      %s22 = sphi 0, %s20
      %s23 = sphi 0, %s21
      %s24 = sphi 0, %s22
      %s25 = sphi 0, %s23
      %s37 = sphi 0, %s39
      %s40 = sphi 0, %s37
      %s41 = sphi 0, %s40
      %s57 = sphi 0, %s41
      %s63 = sphi 0, %s65
      %s66 = sphi 0, %s63
      %s67 = sphi 0, %s66
      %s83 = sphi 0, %s67
    $region4: #{tpu_custom_call.1} parent=1 // loop_header_branch
      %16 = sbr.rel (%p14) target = $region8
    $region5: #{tpu_custom_call.1} parent=1 // loop_body
      %s18 = ssub.s32 %s13, 1
      %s19 = ssub.s32 %s13, 2
      %s26 = sadd.s32 1, %s21
      %p27 = scmp.ge.s32.totalorder %s26, 1
      %s28 = scalar_select %p27, 0, %s26
      %s29 = sadd.s32 1, %s20
      %s30 = scalar_select %p27, %s29, %s20
      %p31 = scmp.ge.s32.totalorder %s30, 2
      %s32 = scalar_select %p31, 0, %s30
      %s33 = sadd.s32 %s20, %s21
      %s34 = sadd.s32 %s32, %s28
      %s35 = ssub.s32 %s33, %s34
      %p36 = scmp.eq.s32.totalorder %s35, 0
      %s38 = sadd.s32 %s37, 1
      %s39 = scalar_select %p36, %s37, %s38
      %p42 = pneg %p36
      %p43 = scmp.eq.s32.totalorder %s13, 1
      %p44 = por %p42, %p43
      %p45 = scmp.ne.s32.totalorder %s37, %s40
      %p46 = scmp.eq.s32.totalorder %s13, 0
      %p47 = por %p45, %p46
      %p48 = scmp.ne.s32.totalorder %s37, %s40
      %p49 = scmp.eq.s32.totalorder %s18, 1
      %p50 = por %p48, %p49
      %p51 = scmp.ne.s32.totalorder %s40, %s41
      %p52 = scmp.eq.s32.totalorder %s18, 0
      %p53 = por %p51, %p52
      %p54 = scmp.ne.s32.totalorder %s40, %s41
      %p55 = scmp.eq.s32.totalorder %s19, 1
      %p56 = por %p54, %p55
      %p58 = scmp.ne.s32.totalorder %s41, %s57
      %p59 = scmp.eq.s32.totalorder %s19, 0
      %p60 = por %p58, %p59
      %s61 = ssub.s32 %s20, %s32
      %p62 = scmp.eq.s32.totalorder %s61, 0
      %s64 = sadd.s32 %s63, 1
      %s65 = scalar_select %p62, %s63, %s64
      %p68 = pneg %p62
      %p69 = scmp.eq.s32.totalorder %s13, 1
      %p70 = por %p68, %p69
      %p71 = scmp.ne.s32.totalorder %s63, %s66
      %p72 = scmp.eq.s32.totalorder %s13, 0
      %p73 = por %p71, %p72
      %p74 = scmp.ne.s32.totalorder %s63, %s66
      %p75 = scmp.eq.s32.totalorder %s18, 1
      %p76 = por %p74, %p75
      %p77 = scmp.ne.s32.totalorder %s66, %s67
      %p78 = scmp.eq.s32.totalorder %s18, 0
      %p79 = por %p77, %p78
      %p80 = scmp.ne.s32.totalorder %s66, %s67
      %p81 = scmp.eq.s32.totalorder %s19, 1
      %p82 = por %p80, %p81
      %p84 = scmp.ne.s32.totalorder %s67, %s83
      %p85 = scmp.eq.s32.totalorder %s19, 0
      %p86 = por %p84, %p85
      %p87 = scmp.le.s32.totalorder 1, %s13
      %p88 = scmp.lt.s32.totalorder %s13, 3
      %p89 = pnand %p87, %p88
      %p90 = pneg %p89
      // Predicated region
      $region9: #{tpu_custom_call.1} parent=5 // pred_check
        _
      $region10: #{tpu_custom_call.1} parent=5 // pred_check_branch
        %92 = sbr.rel (%p89) target = $region12
      $region11: #{tpu_custom_call.1} parent=5 // pred_region
        %s93 = ssub.s32 %s13, 1
      $region12: #{tpu_custom_call.1} parent=5 // pred_fallthru
        _
      %p94 = scmp.lt.s32.totalorder %s13, 2
      // Predicated region
      $region13: #{tpu_custom_call.1} parent=5 // pred_check
        %p95 = pneg %p94
      $region14: #{tpu_custom_call.1} parent=5 // pred_check_branch
        %97 = sbr.rel (%p95) target = $region16
      $region15: #{tpu_custom_call.1} parent=5 // pred_region
        // Predicated region
        $region17: #{tpu_custom_call.1} parent=15 // pred_check
          %p98 = pneg %p47
        $region18: #{tpu_custom_call.1} parent=15 // pred_check_branch
          %100 = sbr.rel (%p98) target = $region20
        $region19: #{tpu_custom_call.1} parent=15 // pred_region
          %s101 = sand.u32 %s37, 1
          %s102 = scalar_lea.sflag [#allocation3], %s101
          %s103 = sand.u32 %s37, 1
          %s104 = smul.addr %s103, 8
          %s105 = scalar_lea.vmem [#allocation2], %s104
          %s106 = sadd.s32 %s20, %s21
          %s108 = ssub.s32 128, 128
          %109 = vsyncadd %s102, %s108
          %s110 = smul.addr %s106, 128
          %s111 = scalar_lea.hbm %s0, %s110
          %s113 = sshll.u32 %s105, 4
          %s114 = int_to_ptr.vmem [resolvable:$true] %s113
          %116 = dma.hbm_to_vmem [thread:$0]  %s111, 128, %s114, %s102
        $region20: #{tpu_custom_call.1} parent=15 // pred_fallthru
          _
      $region16: #{tpu_custom_call.1} parent=5 // pred_fallthru
        _
      %p117 = scmp.le.s32.totalorder 1, %s13
      %p118 = scmp.lt.s32.totalorder %s13, 3
      %p119 = pnand %p117, %p118
      %p120 = pneg %p119
      // Predicated region
      $region21: #{tpu_custom_call.1} parent=5 // pred_check
        _
      $region22: #{tpu_custom_call.1} parent=5 // pred_check_branch
        %122 = sbr.rel (%p119) target = $region24
      $region23: #{tpu_custom_call.1} parent=5 // pred_region
        %s123 = ssub.s32 %s13, 1
        %s124 = sand.u32 %s40, 1
        %s125 = scalar_lea.sflag [#allocation3], %s124
        %s126 = sand.u32 %s40, 1
        %s127 = smul.addr %s126, 8
        %s128 = scalar_lea.vmem [#allocation2], %s127
        // Predicated region
        $region25: #{tpu_custom_call.1} parent=23 // pred_check
          %p129 = pneg %p53
        $region26: #{tpu_custom_call.1} parent=23 // pred_check_branch
          %131 = sbr.rel (%p129) target = $region28
        $region27: #{tpu_custom_call.1} parent=23 // pred_region
          %132 = dma.done %s125, 128
        $region28: #{tpu_custom_call.1} parent=23 // pred_fallthru
          _
        %s133 = sand.u32 %s40, 1
        %s134 = scalar_lea.sflag [#allocation3], %s133
        %s135 = sand.u32 %s40, 1
        %s136 = smul.addr %s135, 8
        %s137 = scalar_lea.vmem [#allocation2], %s136
        %p138 = pneg %p53
        %p139 = pneg %p50
        %p140 = pneg %p79
        %p141 = pneg %p76
        %s142 = sand.u32 %s66, 1
        %s143 = scalar_lea.sflag [#allocation4], %s142
        %s144 = sand.u32 %s66, 1
        %s145 = smul.addr %s144, 8
        %s146 = scalar_lea.vmem [#allocation5], %s145
        %s147 = sadd.s32 %s22, %s23
        %p148 = scmp.eq.s32.totalorder %s23, 0
        // Predicated region
        $region29: #{tpu_custom_call.1} parent=23 // pred_check
          %p149 = pneg %p148
        $region30: #{tpu_custom_call.1} parent=23 // pred_check_branch
          %151 = sbr.rel (%p149) target = $region32
        $region31: #{tpu_custom_call.1} parent=23 // pred_region
          %152 = vst [vmem:[%s146] sm:$0xff] 0.0
        $region32: #{tpu_custom_call.1} parent=23 // pred_fallthru
          _
        %v153 = vld [vmem:[%s128] sm:$0xff]
        %v154 = vld [vmem:[%s146] sm:$0xff]
        %v155 = vadd.f32 %v154, %v153
        %156 = vst [vmem:[%s146] sm:$0xff] %v155
        %s157 = sand.u32 %s66, 1
        %s158 = scalar_lea.sflag [#allocation4], %s157
        %s159 = sand.u32 %s66, 1
        %s160 = smul.addr %s159, 8
        %s161 = scalar_lea.vmem [#allocation5], %s160
        // Predicated region
        $region33: #{tpu_custom_call.1} parent=23 // pred_check
          %p162 = pneg %p76
        $region34: #{tpu_custom_call.1} parent=23 // pred_check_branch
          %164 = sbr.rel (%p162) target = $region36
        $region35: #{tpu_custom_call.1} parent=23 // pred_region
          %s166 = ssub.s32 128, 128
          %167 = vsyncadd %s158, %s166
          %s168 = smul.addr %s22, 128
          %s169 = scalar_lea.hbm %s1, %s168
          %s171 = sshll.u32 %s161, 4
          %s172 = int_to_ptr.vmem [resolvable:$true] %s171
          %174 = dma.vmem_to_hbm [thread:$0]  %s172, 128, %s169, %s158
        $region36: #{tpu_custom_call.1} parent=23 // pred_fallthru
          _
      $region24: #{tpu_custom_call.1} parent=5 // pred_fallthru
        _
      %p175 = scmp.le.s32.totalorder 2, %s13
      // Predicated region
      $region37: #{tpu_custom_call.1} parent=5 // pred_check
        %p176 = pneg %p175
      $region38: #{tpu_custom_call.1} parent=5 // pred_check_branch
        %178 = sbr.rel (%p176) target = $region40
      $region39: #{tpu_custom_call.1} parent=5 // pred_region
        %s179 = ssub.s32 %s13, 2
        // Predicated region
        $region41: #{tpu_custom_call.1} parent=39 // pred_check
          %p180 = pneg %p82
        $region42: #{tpu_custom_call.1} parent=39 // pred_check_branch
          %182 = sbr.rel (%p180) target = $region44
        $region43: #{tpu_custom_call.1} parent=39 // pred_region
          %s183 = sand.u32 %s67, 1
          %s184 = scalar_lea.sflag [#allocation4], %s183
          %s185 = sand.u32 %s67, 1
          %s186 = smul.addr %s185, 8
          %s187 = scalar_lea.vmem [#allocation5], %s186
          %188 = dma.done %s184, 128
        $region44: #{tpu_custom_call.1} parent=39 // pred_fallthru
          _
      $region40: #{tpu_custom_call.1} parent=5 // pred_fallthru
        _
    $region6: #{tpu_custom_call.1} parent=1 // loop_footer
      %s17 = sadd.s32 1, %s13
    $region7: #{tpu_custom_call.1} parent=1 // loop_footer_branch
      %12 = sbr.rel target = $region3
    $region8: #{tpu_custom_call.1} parent=1 // loop_exit
      _
    %189 = vsyncpa [#allocation3], 1
    %s190 = scalar_lea.sflag [#allocation3], 1
    %191 = vsyncpa %s190, 1
    %192 = vsyncpa [#allocation4], 1
    %s193 = scalar_lea.sflag [#allocation4], 1
    %194 = vsyncpa %s193, 1

</llo_original>
